<compile_context>
chip_gen: v5e
topology: v5e:2x2
jax: 0.10.0
libtpu: 0.0.40
codegen_flags: <defaults>
</compile_context>

<pallas_src>
import jax
import jax.numpy as jnp
from jax.experimental import pallas as pl
from jax.experimental.pallas import tpu as pltpu


def _value_proj_kernel(x_ref, w_ref, b_ref, o_ref):
    # out = x @ W_blk + b_blk.
    # (softmax over the [B, 1] score axis is identically 1.0, so attn * v == v;
    #  the q/k/softmax path of the PyTorch forward is dead computation.)
    acc = jnp.dot(x_ref[...], w_ref[...], preferred_element_type=jnp.float32)
    o_ref[...] = (acc + b_ref[...]).astype(o_ref.dtype)


def fold_value_proj(wv, bv, fold):
    """Block-diagonal weight [fold*D, fold*H] and tiled bias [1, fold*H].

    With the row-major reshape x:[B,D] -> xf:[B/fold, fold*D], xf @ Wv_blk
    computes `fold` independent row-GEMMs per folded row, so the result
    reshapes back to x @ Wv exactly.
    """
    D, H = wv.shape
    eye = jnp.eye(fold, dtype=wv.dtype)                       # [fold, fold]
    wv_blk = jnp.einsum("fg,dh->fdgh", eye, wv).reshape(fold * D, fold * H)
    bv_blk = jnp.tile(bv, (1, fold))                          # [1, fold*H]
    return wv_blk, bv_blk


def cross_attention(text_pred, series_pred, params):
    del text_pred  # dead in forward(): softmax over a singleton axis is 1.0
    # The algebraic reduction (attn == 1.0) is only valid for 2-D series_pred,
    # which is also the only rank the PyTorch forward accepts (torch.bmm).
    assert series_pred.ndim == 2, "forward requires 2-D series_pred [B, key_dim]"

    B, D = series_pred.shape
    wv, bv = params["wv"], params["bv"]
    H = wv.shape[1]

    # Lane-fold factor: pack `fold` batch rows into one 128-lane row.
    fold = 128 // D if (D <= 128 and 128 % D == 0) else 1

    # Pad B so the folded array has whole (8,128) tiles (multiple of 8*fold
    # original rows); interior blocks are then fully unmasked and lane-dense.
    row_mult = 8 * fold
    B_pad = row_mult * pl.cdiv(B, row_mult)
    x = series_pred
    if B_pad != B:
        x = jnp.pad(x, ((0, B_pad - B), (0, 0)))
    Bf = B_pad // fold
    xf = x.reshape(Bf, fold * D)  # free row-major reshape

    # Folded weight / bias: prefer precomputed (built once at init), else build.
    if fold > 1:
        if ("wv_blk" in params
                and params["wv_blk"].shape == (fold * D, fold * H)):
            wv_f, bv_f = params["wv_blk"], params["bv_blk"]
        else:
            wv_f, bv_f = fold_value_proj(wv, bv, fold)
    else:
        wv_f, bv_f = wv, bv
    Din, Hout = wv_f.shape

    # Folded-row tile: large (up to 4096 folded rows) to amortize the ~0.35us
    # per-step overhead and stay HBM-bound; >=2 blocks for large B so
    # ("parallel",) shards across v7x's 2 TensorCores; multiple of 8 sublanes.
    # Double-buffered VMEM at 4096: ~12 MiB (< 32 MiB scoped default).
    TBF_MAX = 4096
    tbf = min(TBF_MAX, max(8, 8 * pl.cdiv(pl.cdiv(Bf, 2), 8)))
    grid = (pl.cdiv(Bf, tbf),)

    cost = pl.CostEstimate(
        flops=int(2 * Bf * Din * Hout),
        transcendentals=0,
        bytes_accessed=int(4 * (Bf * Din + Din * Hout + Hout + Bf * Hout)),
    )

    out_f = pl.pallas_call(
        _value_proj_kernel,
        out_shape=jax.ShapeDtypeStruct((Bf, Hout), series_pred.dtype),
        grid=grid,
        in_specs=[
            pl.BlockSpec((tbf, Din), lambda i: (i, 0)),   # folded batch tile
            pl.BlockSpec((Din, Hout), lambda i: (0, 0)),  # Wv_blk: resident
            pl.BlockSpec((1, Hout), lambda i: (0, 0)),    # bv_blk: resident
        ],
        out_specs=pl.BlockSpec((tbf, Hout), lambda i: (i, 0)),
        compiler_params=pltpu.CompilerParams(
            dimension_semantics=("parallel",)),           # v7x 2-TC sharding
        cost_estimate=cost,
    )(xf, wv_f, bv_f)

    # Unfold lanes back to [B, H] and drop the batch padding.
    return out_f.reshape(B_pad, H)[:B]


def init_params(key, query_dim, key_dim, value_dim, hidden_dim):
    """Deterministic PyTorch-Linear-style init: U(-1/sqrt(fan_in), 1/sqrt(fan_in)).

    Also precomputes the folded (block-diagonal) value-proj weight once, per
    the performance review, so the hot path does not rebuild it per call.
    """
    def linear(k, fan_in, fan_out):
        kw, kb = jax.random.split(k)
        bound = 1.0 / jnp.sqrt(fan_in)
        w = jax.random.uniform(kw, (fan_in, fan_out), jnp.float32, -bound, bound)
        b = jax.random.uniform(kb, (1, fan_out), jnp.float32, -bound, bound)
        return w, b

    kq, kk, kv, ko = jax.random.split(key, 4)
    wq, bq = linear(kq, query_dim, hidden_dim)
    wk, bk = linear(kk, key_dim, hidden_dim)
    wv, bv = linear(kv, value_dim, hidden_dim)
    wo, bo = linear(ko, hidden_dim, value_dim)  # output_proj: unused in forward()
    params = {"wq": wq, "bq": bq, "wk": wk, "bk": bk,
              "wv": wv, "bv": bv, "wo": wo, "bo": bo}

    fold = 128 // value_dim if (value_dim <= 128 and 128 % value_dim == 0) else 1
    if fold > 1:
        wv_blk, bv_blk = fold_value_proj(wv, bv, fold)
        params["wv_blk"], params["bv_blk"] = wv_blk, bv_blk
    return params


def reference(text_pred, series_pred, params):
    """Full, PyTorch-faithful path (q/k/softmax included) used to verify the kernel."""
    q = text_pred @ params["wq"] + params["bq"]
    k = series_pred @ params["wk"] + params["bk"]
    v = series_pred @ params["wv"] + params["bv"]
    scores = jnp.sum(q * k, axis=-1, keepdims=True)      # [B, 1]
    attn = jax.nn.softmax(scores, axis=-1)                # == 1.0 (singleton axis)
    return attn * v


if __name__ == "__main__":
    query_dim = 8      # text_len
    key_dim = 16       # == value_dim (key_proj and value_proj share series_pred)
    value_dim = 16
    hidden_dim = 32

    root = jax.random.PRNGKey(0)
    k_text, k_series, k_params = jax.random.split(root, 3)
    params = init_params(k_params, query_dim, key_dim, value_dim, hidden_dim)

    # Small, spec-consistent shapes: single padded block, fold=8.
    B = 2
    text_pred = jax.random.normal(k_text, (B, query_dim), jnp.float32)
    series_pred = jax.random.normal(k_series, (B, key_dim), jnp.float32)

    out = jax.block_until_ready(cross_attention(text_pred, series_pred, params))
    ref = reference(text_pred, series_pred, params)
    assert out.shape == (B, hidden_dim)
    assert jnp.allclose(out, ref, atol=1e-5, rtol=1e-5), "mismatch vs reference (small B)"

    # Larger batch: exercises batch padding (2500 -> 2560), the lane-fold path,
    # and a 2-block parallel grid (both v7x TensorCores participate).
    B2 = 2500
    text2 = jax.random.normal(k_text, (B2, query_dim), jnp.float32)
    series2 = jax.random.normal(k_series, (B2, key_dim), jnp.float32)

    out2 = jax.block_until_ready(cross_attention(text2, series2, params))
    ref2 = reference(text2, series2, params)
    assert out2.shape == (B2, hidden_dim)
    assert jnp.allclose(out2, ref2, atol=1e-5, rtol=1e-5), "mismatch vs reference (large B)"

    # TODO(synk): for tiny batches (<= a few thousand rows) a plain XLA
    # GEMM+bias (no Pallas custom call) would fuse with neighbors and skip the
    # fixed launch overhead entirely; kept on the Pallas path here by design.
    print("KERNEL_OK")
</pallas_src>

<mosaic_0001>
module attributes {stable_mosaic.version = 11 : i64} {
  func.func @_value_proj_kernel(%arg0: i32, %arg1: memref<8x128xf32, #tpu.memory_space<vmem>>, %arg2: memref<128x256xf32, #tpu.memory_space<vmem>>, %arg3: memref<1x256xf32, #tpu.memory_space<vmem>>, %arg4: memref<8x256xf32, #tpu.memory_space<vmem>>) attributes {dimension_semantics = [#tpu.dimension_semantics<parallel>], iteration_bounds = array<i64: 1>, scalar_prefetch = 0 : i64, scratch_operands = 0 : i64, tpu.core_type = #tpu.core_type<tc>, window_params = [{transform_indices = @transform_0, window_bounds = array<i64: 8, 128>}, {pipeline_mode = #tpu.pipeline_mode<synchronous>, transform_indices = @transform_1, window_bounds = array<i64: 128, 256>}, {pipeline_mode = #tpu.pipeline_mode<synchronous>, transform_indices = @transform_2, window_bounds = array<i64: 1, 256>}, {transform_indices = @transform_3, window_bounds = array<i64: 8, 256>}]} {
    %c0 = arith.constant 0 : index
    %c0_0 = arith.constant 0 : index
    %0 = vector.load %arg1[%c0, %c0_0] : memref<8x128xf32, #tpu.memory_space<vmem>>, vector<8x128xf32>
    %c0_1 = arith.constant 0 : index
    %c0_2 = arith.constant 0 : index
    %1 = vector.load %arg2[%c0_1, %c0_2] : memref<128x256xf32, #tpu.memory_space<vmem>>, vector<128x256xf32>
    %cst = arith.constant dense<0.000000e+00> : vector<8x256xf32>
    %2 = tpu.matmul %0, %1, %cst {dimension_numbers = #tpu.dot_dimension_numbers<[1], [0], [0], [1], [0, 0, 1, 1], [], []>} : vector<8x128xf32>, vector<128x256xf32>, vector<8x256xf32> -> vector<8x256xf32>
    %c0_3 = arith.constant 0 : index
    %c0_4 = arith.constant 0 : index
    %3 = vector.load %arg3[%c0_3, %c0_4] : memref<1x256xf32, #tpu.memory_space<vmem>>, vector<1x256xf32>
    %4 = vector.broadcast %3 : vector<1x256xf32> to vector<8x256xf32>
    %5 = arith.addf %2, %4 : vector<8x256xf32>
    %c0_5 = arith.constant 0 : index
    %c0_6 = arith.constant 0 : index
    %6 = vector.load %arg4[%c0_5, %c0_6] : memref<8x256xf32, #tpu.memory_space<vmem>>, vector<8x256xf32>
    tpu.vector_store %arg4[%c0_5, %c0_6], %5 {strides = array<i32>} : memref<8x256xf32, #tpu.memory_space<vmem>>, vector<8x256xf32>,
    return
  }
  func.func @transform_0(%arg0: i32) -> (i32, i32) {
    %c0_i32 = arith.constant 0 : i32
    %c0_i32_0 = arith.constant 0 : i32
    return %arg0, %c0_i32 : i32, i32
  }
  func.func @transform_1(%arg0: i32) -> (i32, i32) {
    %c0_i32 = arith.constant 0 : i32
    %c0_i32_0 = arith.constant 0 : i32
    %c0_i32_1 = arith.constant 0 : i32
    return %c0_i32, %c0_i32_0 : i32, i32
  }
  func.func @transform_2(%arg0: i32) -> (i32, i32) {
    %c0_i32 = arith.constant 0 : i32
    %c0_i32_0 = arith.constant 0 : i32
    %c0_i32_1 = arith.constant 0 : i32
    return %c0_i32, %c0_i32_0 : i32, i32
  }
  func.func @transform_3(%arg0: i32) -> (i32, i32) {
    %c0_i32 = arith.constant 0 : i32
    %c0_i32_0 = arith.constant 0 : i32
    return %arg0, %c0_i32 : i32, i32
  }
}

</mosaic_0001>

<llo_original>
// kernel: tpu_custom_call.1
$region0: #{tpu_custom_call.1}
  #allocation0 [shape = 'u32[]', space=smem, size = 0x4, offset = 0x4, fixed_abs, tag = 'smem constant byte address 0x4 - core index']
  #allocation1 [shape = 'u32[72,128]{1,0:T(1,128)}', space=vmem, size = 0x9000, scoped, tag = 'internal scratch']
  %s0 = inlined_call_operand.hbm [shape: f32[8,128], index: 0, kind: input, shape index: {}]
  %s1 = inlined_call_operand.hbm [shape: f32[128,256], index: 1, kind: input, shape index: {}]
  %s2 = inlined_call_operand.hbm [shape: f32[1,256], index: 2, kind: input, shape index: {}]
  %s3 = inlined_call_operand.hbm [shape: f32[8,256], index: 3, kind: output, shape index: {}]
  %s4 = sld [smem:[#allocation0]]
  $region34: #{tpu_custom_call.1} parent=0
    _
  %s6 = ssub.s32 1, %s4
  %s7 = scalar_select 0, %s6, %s4
  $region1: #{tpu_custom_call.1} parent=0
    #allocation2 [shape = 'u8[4096]{0}', space=vmem, size = 0x1000, scoped, tag = 'input window, operand 0, single buffered']
    #allocation3 [shape = 's32[1]{0}', space=sflag, size = 0x4, scoped, tag = 'scoped memory for tpu_custom_call.1']
    #allocation4 [shape = 's32[1]{0}', space=sflag, size = 0x4, scoped, tag = 'scoped memory for tpu_custom_call.1']
    #allocation5 [shape = 'u8[131072]{0}', space=vmem, size = 0x20000, scoped, tag = 'input window, operand 1, single buffered']
    #allocation6 [shape = 's32[1]{0}', space=sflag, size = 0x4, scoped, tag = 'scoped memory for tpu_custom_call.1']
    #allocation7 [shape = 'u8[1024]{0}', space=vmem, size = 0x400, scoped, tag = 'input window, operand 2, single buffered']
    #allocation8 [shape = 'u8[8192]{0}', space=vmem, size = 0x2000, scoped, tag = 'output window, operand 0, single buffered']
    %8 = vsyncpa [#allocation3], 0
    %9 = vsyncpa [#allocation6], 0
    %10 = vsyncpa [#allocation4], 0
    // Predicated region
    $region2: #{tpu_custom_call.1} parent=1 // pred_check
      _
    $region3: #{tpu_custom_call.1} parent=1 // pred_check_branch
      %12 = sbr.rel (0) target = $region5
    $region4: #{tpu_custom_call.1} parent=1 // pred_region
      %14 = vsyncadd [#allocation3], 0
      %s16 = sshll.u32 %s0, 4
      %s17 = int_to_ptr.hbm [resolvable:$true] %s16
      %s18 = sshll.u32 [#allocation2], 4
      %s19 = int_to_ptr.vmem [resolvable:$true] %s18
      %21 = dma.hbm_to_vmem [thread:$0]  %s17, 128, %s19, [#allocation3]
    $region5: #{tpu_custom_call.1} parent=1 // pred_fallthru
      _
    // Predicated region
    $region6: #{tpu_custom_call.1} parent=1 // pred_check
      _
    $region7: #{tpu_custom_call.1} parent=1 // pred_check_branch
      %23 = sbr.rel (0) target = $region9
    $region8: #{tpu_custom_call.1} parent=1 // pred_region
      %25 = vsyncadd [#allocation6], 0
      %s26 = sshll.u32 %s1, 4
      %s27 = int_to_ptr.hbm [resolvable:$true] %s26
      %s28 = sshll.u32 [#allocation5], 4
      %s29 = int_to_ptr.vmem [resolvable:$true] %s28
      %34 = dma.hbm_to_vmem [thread:$0]  %s27, 4096, %s29, [#allocation6], 256, 256, 16
    $region9: #{tpu_custom_call.1} parent=1 // pred_fallthru
      _
    // Predicated region
    $region10: #{tpu_custom_call.1} parent=1 // pred_check
      _
    $region11: #{tpu_custom_call.1} parent=1 // pred_check_branch
      %36 = sbr.rel (0) target = $region13
    $region12: #{tpu_custom_call.1} parent=1 // pred_region
      %38 = vsyncadd [#allocation6], 0
      %s40 = sshll.u32 %s2, 4
      %s41 = int_to_ptr.hbm [resolvable:$true] %s40
      %s42 = sshll.u32 [#allocation7], 4
      %s43 = int_to_ptr.vmem [resolvable:$true] %s42
      %45 = dma.hbm_to_vmem [thread:$0]  %s41, 32, %s43, [#allocation6]
    $region13: #{tpu_custom_call.1} parent=1 // pred_fallthru
      _
    // Predicated region
    $region14: #{tpu_custom_call.1} parent=1 // pred_check
      _
    $region15: #{tpu_custom_call.1} parent=1 // pred_check_branch
      %47 = sbr.rel (0) target = $region17
    $region16: #{tpu_custom_call.1} parent=1 // pred_region
      %49 = dma.done [#allocation3], 128
    $region17: #{tpu_custom_call.1} parent=1 // pred_fallthru
      _
    // Predicated region
    $region18: #{tpu_custom_call.1} parent=1 // pred_check
      _
    $region19: #{tpu_custom_call.1} parent=1 // pred_check_branch
      %51 = sbr.rel (0) target = $region21
    $region20: #{tpu_custom_call.1} parent=1 // pred_region
      %53 = dma.done [#allocation6], 4096
    $region21: #{tpu_custom_call.1} parent=1 // pred_fallthru
      _
    // Predicated region
    $region22: #{tpu_custom_call.1} parent=1 // pred_check
      _
    $region23: #{tpu_custom_call.1} parent=1 // pred_check_branch
      %55 = sbr.rel (0) target = $region25
    $region24: #{tpu_custom_call.1} parent=1 // pred_region
      %57 = dma.done [#allocation6], 32
    $region25: #{tpu_custom_call.1} parent=1 // pred_fallthru
      _
    %v58 = vld [vmem:[#allocation2] sm:$0xff]
    %v59 = vld [vmem:[#allocation5] sm:$0xff]
    %v60 = vld [vmem:[#allocation5 + $0x8] sm:$0xff]
    %v61 = vld [vmem:[#allocation5 + $0x10] sm:$0xff]
    %v62 = vld [vmem:[#allocation5 + $0x18] sm:$0xff]
    %v63 = vld [vmem:[#allocation5 + $0x20] sm:$0xff]
    %v64 = vld [vmem:[#allocation5 + $0x28] sm:$0xff]
    %v65 = vld [vmem:[#allocation5 + $0x30] sm:$0xff]
    %v66 = vld [vmem:[#allocation5 + $0x38] sm:$0xff]
    %v67 = vld [vmem:[#allocation5 + $0x40] sm:$0xff]
    %v68 = vld [vmem:[#allocation5 + $0x48] sm:$0xff]
    %v69 = vld [vmem:[#allocation5 + $0x50] sm:$0xff]
    %v70 = vld [vmem:[#allocation5 + $0x58] sm:$0xff]
    %v71 = vld [vmem:[#allocation5 + $0x60] sm:$0xff]
    %v72 = vld [vmem:[#allocation5 + $0x68] sm:$0xff]
    %v73 = vld [vmem:[#allocation5 + $0x70] sm:$0xff]
    %v74 = vld [vmem:[#allocation5 + $0x78] sm:$0xff]
    %v75 = vld [vmem:[#allocation5 + $0x80] sm:$0xff]
    %v76 = vld [vmem:[#allocation5 + $0x88] sm:$0xff]
    %v77 = vld [vmem:[#allocation5 + $0x90] sm:$0xff]
    %v78 = vld [vmem:[#allocation5 + $0x98] sm:$0xff]
    %v79 = vld [vmem:[#allocation5 + $0xa0] sm:$0xff]
    %v80 = vld [vmem:[#allocation5 + $0xa8] sm:$0xff]
    %v81 = vld [vmem:[#allocation5 + $0xb0] sm:$0xff]
    %v82 = vld [vmem:[#allocation5 + $0xb8] sm:$0xff]
    %v83 = vld [vmem:[#allocation5 + $0xc0] sm:$0xff]
    %v84 = vld [vmem:[#allocation5 + $0xc8] sm:$0xff]
    %v85 = vld [vmem:[#allocation5 + $0xd0] sm:$0xff]
    %v86 = vld [vmem:[#allocation5 + $0xd8] sm:$0xff]
    %v87 = vld [vmem:[#allocation5 + $0xe0] sm:$0xff]
    %v88 = vld [vmem:[#allocation5 + $0xe8] sm:$0xff]
    %v89 = vld [vmem:[#allocation5 + $0xf0] sm:$0xff]
    %v90 = vld [vmem:[#allocation5 + $0xf8] sm:$0xff]
    %v91 = vld [vmem:[#allocation7] sm:$0x3]
    %v93 = vperm.slane %v91, 0
    %v94 = vperm.slane %v91, 1
    %97 = vmatpush.msra.mxu0 %v89
    %98 = vmatpush.msra.mxu0 %v87
    %99 = vmatpush.msra.mxu0 %v85
    %100 = vmatpush.msra.mxu0 %v83
    %101 = vmatpush.msra.mxu0 %v81
    %102 = vmatpush.msra.mxu0 %v79
    %103 = vmatpush.msra.mxu0 %v77
    %104 = vmatpush.msra.mxu0 %v75
    %105 = vmatpush.msra.mxu0 %v73
    %106 = vmatpush.msra.mxu0 %v71
    %107 = vmatpush.msra.mxu0 %v69
    %108 = vmatpush.msra.mxu0 %v67
    %109 = vmatpush.msra.mxu0 %v65
    %110 = vmatpush.msra.mxu0 %v63
    %111 = vmatpush.msra.mxu0 %v61
    %112 = vmatpush.msra.mxu0 %v59
    %113 = vmatmul.f32.gmra.mxu0 %v58
    %v114 = vpop.f32.mrf.mxu0
    %v115 = vadd.f32 %v93, %v114
    %116 = vdwg.mxu0
    %117 = vmatpush.msra.mxu0 %v90
    %118 = vmatpush.msra.mxu0 %v88
    %119 = vmatpush.msra.mxu0 %v86
    %120 = vmatpush.msra.mxu0 %v84
    %121 = vmatpush.msra.mxu0 %v82
    %122 = vmatpush.msra.mxu0 %v80
    %123 = vmatpush.msra.mxu0 %v78
    %124 = vmatpush.msra.mxu0 %v76
    %125 = vmatpush.msra.mxu0 %v74
    %126 = vmatpush.msra.mxu0 %v72
    %127 = vmatpush.msra.mxu0 %v70
    %128 = vmatpush.msra.mxu0 %v68
    %129 = vmatpush.msra.mxu0 %v66
    %130 = vmatpush.msra.mxu0 %v64
    %131 = vmatpush.msra.mxu0 %v62
    %132 = vmatpush.msra.mxu0 %v60
    %133 = vmatmul.f32.gmra.mxu0 %v58
    %v134 = vpop.f32.mrf.mxu0
    %v135 = vadd.f32 %v94, %v134
    %136 = vdwg.mxu0
    %137 = vst [vmem:[#allocation8] sm:$0xff] %v115
    %138 = vst [vmem:[#allocation8 + $0x8] sm:$0xff] %v135
    // Predicated region
    $region26: #{tpu_custom_call.1} parent=1 // pred_check
      _
    $region27: #{tpu_custom_call.1} parent=1 // pred_check_branch
      %140 = sbr.rel (0) target = $region29
    $region28: #{tpu_custom_call.1} parent=1 // pred_region
      %142 = vsyncadd [#allocation4], 0
      %s144 = sshll.u32 [#allocation8], 4
      %s145 = int_to_ptr.vmem [resolvable:$true] %s144
      %s146 = sshll.u32 %s3, 4
      %s147 = int_to_ptr.hbm [resolvable:$true] %s146
      %149 = dma.vmem_to_hbm [thread:$0]  %s145, 256, %s147, [#allocation4]
    $region29: #{tpu_custom_call.1} parent=1 // pred_fallthru
      _
    // Predicated region
    $region30: #{tpu_custom_call.1} parent=1 // pred_check
      _
    $region31: #{tpu_custom_call.1} parent=1 // pred_check_branch
      %151 = sbr.rel (0) target = $region33
    $region32: #{tpu_custom_call.1} parent=1 // pred_region
      %153 = dma.done [#allocation4], 256
    $region33: #{tpu_custom_call.1} parent=1 // pred_fallthru
      _
    %154 = vsyncpa [#allocation3], 1
    %155 = vsyncpa [#allocation6], 1
    %156 = vsyncpa [#allocation4], 1

</llo_original>
